<compile_context>
chip_gen: v6e
topology: v6e:2x2x1
jax: 0.10.0
libtpu: 0.0.40
codegen_flags: <defaults>
</compile_context>

<pallas_src>
import math
import jax
import jax.numpy as jnp
from jax.experimental import pallas as pl
from jax.experimental.pallas import tpu as pltpu


_LANE = 128                      # lane-dense output width
_TK_CAP = 512                    # cap on node-reduction tile (v7x VMEM friendly)
_VMEM_LIMIT = 48 * 1024 * 1024   # explicit scoped-VMEM limit (safe on v5e/v6e/v7x)


def _round_up(x, m):
    return ((x + m - 1) // m) * m


# ---------------------------------------------------------------------------
# Kernels
# ---------------------------------------------------------------------------
def _gcn_single_body(a_ref, x_ref, w_ref, o_ref, bias_ref):
    """Whole node-reduction in one step: write straight to o_ref (no scratch)."""
    support = jnp.dot(x_ref[...], w_ref[...], preferred_element_type=jnp.float32)
    out = jnp.dot(a_ref[...], support.astype(a_ref.dtype),
                  preferred_element_type=jnp.float32)
    if bias_ref is not None:
        out = out + bias_ref[...]
    o_ref[...] = out.astype(o_ref.dtype)


def _gcn_single_kernel_bias(a_ref, x_ref, w_ref, bias_ref, o_ref):
    _gcn_single_body(a_ref, x_ref, w_ref, o_ref, bias_ref)


def _gcn_single_kernel_nobias(a_ref, x_ref, w_ref, o_ref):
    _gcn_single_body(a_ref, x_ref, w_ref, o_ref, None)


def _gcn_reduce_body(a_ref, x_ref, w_ref, o_ref, acc_ref, bias_ref):
    """Node-reduction split over grid axis 1; accumulate into f32 VMEM scratch."""
    k = pl.program_id(1)

    @pl.when(k == 0)
    def _():
        acc_ref[...] = jnp.zeros_like(acc_ref)

    # support block (tk, n_pad) computed on the fly: never written to HBM.
    support = jnp.dot(x_ref[...], w_ref[...], preferred_element_type=jnp.float32)
    acc_ref[...] += jnp.dot(a_ref[...], support.astype(a_ref.dtype),
                            preferred_element_type=jnp.float32)

    @pl.when(k == pl.num_programs(1) - 1)
    def _():
        out = acc_ref[...]
        if bias_ref is not None:
            out = out + bias_ref[...]
        o_ref[...] = out.astype(o_ref.dtype)


def _gcn_reduce_kernel_bias(a_ref, x_ref, w_ref, bias_ref, o_ref, acc_ref):
    _gcn_reduce_body(a_ref, x_ref, w_ref, o_ref, acc_ref, bias_ref)


def _gcn_reduce_kernel_nobias(a_ref, x_ref, w_ref, o_ref, acc_ref):
    _gcn_reduce_body(a_ref, x_ref, w_ref, o_ref, acc_ref, None)


# ---------------------------------------------------------------------------
# Wrapper
# ---------------------------------------------------------------------------
def graph_convolution(adjacency, input_feature, weight, bias=None):
    """Pallas equivalent of GraphConvolution.forward: A @ (X @ Theta) + bias."""
    num_nodes, input_dim = input_feature.shape
    w_in, output_dim = weight.shape
    assert w_in == input_dim

    # ---- tile sizes --------------------------------------------------------
    if num_nodes >= 1024:
        tm = 512
    elif num_nodes > 256:
        tm = 256
    else:
        tm = 128
    m_pad = _round_up(num_nodes, tm)

    k_pad = _round_up(num_nodes, _LANE)
    if k_pad <= _TK_CAP:
        tk = k_pad                        # single reduction step
    else:
        tk = _TK_CAP
        k_pad = _round_up(num_nodes, tk)
    nk = k_pad // tk

    n_pad = _round_up(output_dim, _LANE)  # lane-dense output / weight columns

    # ---- pad / cast inputs at the wrapper ----------------------------------
    # TODO(synk): adjacency is a torch.sparse tensor in the reference; the Pallas
    #             kernel uses the semantically equivalent dense (bf16) matmul.
    a_p = jnp.pad(adjacency.astype(jnp.bfloat16),
                  ((0, m_pad - num_nodes), (0, k_pad - num_nodes)))
    x_p = jnp.pad(input_feature.astype(jnp.float32),
                  ((0, k_pad - num_nodes), (0, 0)))
    w_p = jnp.pad(weight.astype(jnp.float32),
                  ((0, 0), (0, n_pad - output_dim)))
    inputs = [a_p, x_p, w_p]

    use_bias = bias is not None
    if use_bias:
        b_p = jnp.pad(bias.astype(jnp.float32),
                      (0, n_pad - output_dim)).reshape(1, n_pad)
        inputs.append(b_p)

    out_shape = jax.ShapeDtypeStruct((m_pad, n_pad), jnp.float32)

    if nk == 1:
        # single reduction step: no accumulator scratch, direct store.
        grid = (m_pad // tm,)
        in_specs = [
            pl.BlockSpec((tm, k_pad), lambda i: (i, 0)),           # A tile
            pl.BlockSpec((k_pad, input_dim), lambda i: (0, 0)),    # X (full)
            pl.BlockSpec((input_dim, n_pad), lambda i: (0, 0)),    # Theta (full)
        ]
        if use_bias:
            in_specs.append(pl.BlockSpec((1, n_pad), lambda i: (0, 0)))
        out_specs = pl.BlockSpec((tm, n_pad), lambda i: (i, 0))
        scratch_shapes = []
        kernel = _gcn_single_kernel_bias if use_bias else _gcn_single_kernel_nobias
        dims = ("parallel",)
    else:
        grid = (m_pad // tm, nk)
        in_specs = [
            pl.BlockSpec((tm, tk), lambda i, k: (i, k)),           # A tile
            pl.BlockSpec((tk, input_dim), lambda i, k: (k, 0)),    # X block
            pl.BlockSpec((input_dim, n_pad), lambda i, k: (0, 0)), # Theta (full)
        ]
        if use_bias:
            in_specs.append(pl.BlockSpec((1, n_pad), lambda i, k: (0, 0)))
        out_specs = pl.BlockSpec((tm, n_pad), lambda i, k: (i, 0))
        scratch_shapes = [pltpu.VMEM((tm, n_pad), jnp.float32)]
        kernel = _gcn_reduce_kernel_bias if use_bias else _gcn_reduce_kernel_nobias
        dims = ("parallel", "arbitrary")

    out = pl.pallas_call(
        kernel,
        out_shape=out_shape,
        grid_spec=pltpu.PrefetchScalarGridSpec(
            num_scalar_prefetch=0,
            grid=grid,
            in_specs=in_specs,
            out_specs=out_specs,
            scratch_shapes=scratch_shapes,
        ),
        compiler_params=pltpu.CompilerParams(
            dimension_semantics=dims,
            vmem_limit_bytes=_VMEM_LIMIT,
        ),
    )(*inputs)

    return out[:num_nodes, :output_dim]


def init_params(key, input_dim, output_dim, use_bias=True):
    """Deterministic init mimicking kaiming_uniform_ (uniform in +-bound) and zero bias."""
    fan_in = input_dim
    bound = math.sqrt(2.0) * math.sqrt(3.0 / fan_in)
    weight = jax.random.uniform(
        key, (input_dim, output_dim), jnp.float32, minval=-bound, maxval=bound
    )
    bias = jnp.zeros((output_dim,), jnp.float32) if use_bias else None
    return weight, bias


if __name__ == "__main__":
    key = jax.random.PRNGKey(0)
    k_x, k_a, k_w = jax.random.split(key, 3)

    num_nodes = 128
    input_dim = 32
    output_dim = 16

    # deterministic inputs
    x = jax.random.normal(k_x, (num_nodes, input_dim), jnp.float32)
    # symmetric row-normalized-ish dense adjacency
    a_raw = jax.random.uniform(k_a, (num_nodes, num_nodes), jnp.float32)
    adjacency = (a_raw + a_raw.T) / num_nodes

    weight, bias = init_params(k_w, input_dim, output_dim, use_bias=True)

    gcn = jax.jit(graph_convolution)
    out = gcn(adjacency, x, weight, bias)
    out = jax.block_until_ready(out)

    # sanity check vs plain JAX f32 reference (tolerance accounts for the bf16
    # adjacency / support casts inside the kernel)
    ref = adjacency @ (x @ weight) + bias
    assert out.shape == (num_nodes, output_dim)
    err = float(jnp.max(jnp.abs(out - ref)))
    scale = float(jnp.max(jnp.abs(ref)))
    assert err <= 3e-2 * scale + 1e-3, f"max abs err {err} vs scale {scale}"

    print("KERNEL_OK")
</pallas_src>

<mosaic_0001>
module attributes {stable_mosaic.version = 11 : i64} {
  func.func @_gcn_single_kernel_bias(%arg0: i32, %arg1: memref<128x128xbf16, #tpu.memory_space<vmem>>, %arg2: memref<128x32xf32, #tpu.memory_space<vmem>>, %arg3: memref<32x128xf32, #tpu.memory_space<vmem>>, %arg4: memref<1x128xf32, #tpu.memory_space<vmem>>, %arg5: memref<128x128xf32, #tpu.memory_space<vmem>>) attributes {dimension_semantics = [#tpu.dimension_semantics<parallel>], iteration_bounds = array<i64: 1>, scalar_prefetch = 0 : i64, scratch_operands = 0 : i64, tpu.core_type = #tpu.core_type<tc>, window_params = [{transform_indices = @transform_0, window_bounds = array<i64: 128, 128>}, {pipeline_mode = #tpu.pipeline_mode<synchronous>, transform_indices = @transform_1, window_bounds = array<i64: 128, 32>}, {pipeline_mode = #tpu.pipeline_mode<synchronous>, transform_indices = @transform_2, window_bounds = array<i64: 32, 128>}, {pipeline_mode = #tpu.pipeline_mode<synchronous>, transform_indices = @transform_3, window_bounds = array<i64: 1, 128>}, {transform_indices = @transform_4, window_bounds = array<i64: 128, 128>}]} {
    %c0 = arith.constant 0 : index
    %c0_0 = arith.constant 0 : index
    %0 = vector.load %arg2[%c0, %c0_0] : memref<128x32xf32, #tpu.memory_space<vmem>>, vector<128x32xf32>
    %c0_1 = arith.constant 0 : index
    %c0_2 = arith.constant 0 : index
    %1 = vector.load %arg3[%c0_1, %c0_2] : memref<32x128xf32, #tpu.memory_space<vmem>>, vector<32x128xf32>
    %cst = arith.constant dense<0.000000e+00> : vector<128x128xf32>
    %2 = tpu.matmul %0, %1, %cst {dimension_numbers = #tpu.dot_dimension_numbers<[1], [0], [0], [1], [0, 0, 1, 1], [], []>} : vector<128x32xf32>, vector<32x128xf32>, vector<128x128xf32> -> vector<128x128xf32>
    %c0_3 = arith.constant 0 : index
    %c0_4 = arith.constant 0 : index
    %3 = vector.load %arg1[%c0_3, %c0_4] : memref<128x128xbf16, #tpu.memory_space<vmem>>, vector<128x128xbf16>
    %4 = arith.truncf %2 : vector<128x128xf32> to vector<128x128xbf16>
    %cst_5 = arith.constant dense<0.000000e+00> : vector<128x128xf32>
    %5 = tpu.matmul %3, %4, %cst_5 {dimension_numbers = #tpu.dot_dimension_numbers<[1], [0], [0], [1], [0, 0, 1, 1], [], []>} : vector<128x128xbf16>, vector<128x128xbf16>, vector<128x128xf32> -> vector<128x128xf32>
    %c0_6 = arith.constant 0 : index
    %c0_7 = arith.constant 0 : index
    %6 = vector.load %arg4[%c0_6, %c0_7] : memref<1x128xf32, #tpu.memory_space<vmem>>, vector<1x128xf32>
    %7 = vector.broadcast %6 : vector<1x128xf32> to vector<128x128xf32>
    %8 = arith.addf %5, %7 : vector<128x128xf32>
    %c0_8 = arith.constant 0 : index
    %c0_9 = arith.constant 0 : index
    %9 = vector.load %arg5[%c0_8, %c0_9] : memref<128x128xf32, #tpu.memory_space<vmem>>, vector<128x128xf32>
    tpu.vector_store %arg5[%c0_8, %c0_9], %8 {strides = array<i32>} : memref<128x128xf32, #tpu.memory_space<vmem>>, vector<128x128xf32>,
    return
  }
  func.func @transform_0(%arg0: i32) -> (i32, i32) {
    %c0_i32 = arith.constant 0 : i32
    %c0_i32_0 = arith.constant 0 : i32
    return %arg0, %c0_i32 : i32, i32
  }
  func.func @transform_1(%arg0: i32) -> (i32, i32) {
    %c0_i32 = arith.constant 0 : i32
    %c0_i32_0 = arith.constant 0 : i32
    %c0_i32_1 = arith.constant 0 : i32
    return %c0_i32, %c0_i32_0 : i32, i32
  }
  func.func @transform_2(%arg0: i32) -> (i32, i32) {
    %c0_i32 = arith.constant 0 : i32
    %c0_i32_0 = arith.constant 0 : i32
    %c0_i32_1 = arith.constant 0 : i32
    return %c0_i32, %c0_i32_0 : i32, i32
  }
  func.func @transform_3(%arg0: i32) -> (i32, i32) {
    %c0_i32 = arith.constant 0 : i32
    %c0_i32_0 = arith.constant 0 : i32
    %c0_i32_1 = arith.constant 0 : i32
    return %c0_i32, %c0_i32_0 : i32, i32
  }
  func.func @transform_4(%arg0: i32) -> (i32, i32) {
    %c0_i32 = arith.constant 0 : i32
    %c0_i32_0 = arith.constant 0 : i32
    return %arg0, %c0_i32 : i32, i32
  }
}

</mosaic_0001>

<llo_original>
// kernel: graph_convolution.1
$region0: #{graph_convolution.1}
  #allocation0 [shape = 'u32[]', space=smem, size = 0x4, offset = 0x4, fixed_abs, tag = 'smem constant byte address 0x4 - core index']
  #allocation1 [shape = 'u32[144,128]{1,0:T(1,128)}', space=vmem, size = 0x12000, scoped, tag = 'internal scratch']
  %s0 = inlined_call_operand.vmem [shape: bf16[128,128], index: 0, kind: input, shape index: {}]
  %s1 = inlined_call_operand.vmem [shape: f32[128,32], index: 1, kind: input, shape index: {}]
  %s2 = inlined_call_operand.vmem [shape: f32[32,128], index: 2, kind: input, shape index: {}]
  %s3 = inlined_call_operand.vmem [shape: f32[1,128], index: 3, kind: input, shape index: {}]
  %s4 = inlined_call_operand.vmem [shape: f32[128,128], index: 4, kind: output, shape index: {}]
  %s5 = sld [smem:[#allocation0]]
  $region26: #{graph_convolution.1} parent=0
    _
  %s7 = ssub.s32 1, %s5
  %s8 = scalar_select 0, %s7, %s5
  // Predicated region
  $region2: #{graph_convolution.1} parent=0 // pred_check
    _
  $region3: #{graph_convolution.1} parent=0 // pred_check_branch
    %10 = sbr.rel (0) target = $region5
  $region4: #{graph_convolution.1} parent=0 // pred_region
    _
  $region5: #{graph_convolution.1} parent=0 // pred_fallthru
    _
  // Predicated region
  $region6: #{graph_convolution.1} parent=0 // pred_check
    _
  $region7: #{graph_convolution.1} parent=0 // pred_check_branch
    %12 = sbr.rel (0) target = $region9
  $region8: #{graph_convolution.1} parent=0 // pred_region
    _
  $region9: #{graph_convolution.1} parent=0 // pred_fallthru
    _
  // Predicated region
  $region10: #{graph_convolution.1} parent=0 // pred_check
    _
  $region11: #{graph_convolution.1} parent=0 // pred_check_branch
    %14 = sbr.rel (0) target = $region13
  $region12: #{graph_convolution.1} parent=0 // pred_region
    _
  $region13: #{graph_convolution.1} parent=0 // pred_fallthru
    _
  // Predicated region
  $region14: #{graph_convolution.1} parent=0 // pred_check
    _
  $region15: #{graph_convolution.1} parent=0 // pred_check_branch
    %16 = sbr.rel (0) target = $region17
  $region16: #{graph_convolution.1} parent=0 // pred_region
    _
  $region17: #{graph_convolution.1} parent=0 // pred_fallthru
    _
  %v18 = vld [vmem:[%s1] sm:$0xff]
  %v19 = vld [vmem:[%s1 + $0x8] sm:$0xff]
  %v20 = vld [vmem:[%s1 + $0x10] sm:$0xff]
  %v21 = vld [vmem:[%s1 + $0x18] sm:$0xff]
  %v22 = vld [vmem:[%s1 + $0x20] sm:$0xff]
  %v23 = vld [vmem:[%s1 + $0x28] sm:$0xff]
  %v24 = vld [vmem:[%s1 + $0x30] sm:$0xff]
  %v25 = vld [vmem:[%s1 + $0x38] sm:$0xff]
  %v26 = vld [vmem:[%s1 + $0x40] sm:$0xff]
  %v27 = vld [vmem:[%s1 + $0x48] sm:$0xff]
  %v28 = vld [vmem:[%s1 + $0x50] sm:$0xff]
  %v29 = vld [vmem:[%s1 + $0x58] sm:$0xff]
  %v30 = vld [vmem:[%s1 + $0x60] sm:$0xff]
  %v31 = vld [vmem:[%s1 + $0x68] sm:$0xff]
  %v32 = vld [vmem:[%s1 + $0x70] sm:$0xff]
  %v33 = vld [vmem:[%s1 + $0x78] sm:$0xff]
  %v34 = vld [vmem:[%s2] sm:$0xff]
  %v35 = vld [vmem:[%s2 + $0x8] sm:$0xff]
  %v36 = vld [vmem:[%s2 + $0x10] sm:$0xff]
  %v37 = vld [vmem:[%s2 + $0x18] sm:$0xff]
  %vm38 = vcmask 261120
  %v40 = vsel %vm38, %v18, 0
  %v43 = vsel %vm38, %v19, 0
  %v46 = vsel %vm38, %v20, 0
  %v49 = vsel %vm38, %v21, 0
  %v52 = vsel %vm38, %v22, 0
  %v55 = vsel %vm38, %v23, 0
  %v58 = vsel %vm38, %v24, 0
  %v61 = vsel %vm38, %v25, 0
  %v64 = vsel %vm38, %v26, 0
  %v67 = vsel %vm38, %v27, 0
  %v70 = vsel %vm38, %v28, 0
  %v73 = vsel %vm38, %v29, 0
  %v76 = vsel %vm38, %v30, 0
  %v79 = vsel %vm38, %v31, 0
  %v82 = vsel %vm38, %v32, 0
  %v85 = vsel %vm38, %v33, 0
  %87 = vmatprep.subr.mxu0 0.0
  %88 = vmatpush1.msra.mxu0 0.0
  %89 = vmatprep.subr.mxu0 0.0
  %90 = vmatpush1.msra.mxu0 0.0
  %91 = vmatprep.subr.mxu0 0.0
  %92 = vmatpush1.msra.mxu0 0.0
  %93 = vmatprep.subr.mxu0 0.0
  %94 = vmatpush1.msra.mxu0 0.0
  %95 = vmatprep.subr.mxu0 0.0
  %96 = vmatpush1.msra.mxu0 0.0
  %97 = vmatprep.subr.mxu0 0.0
  %98 = vmatpush1.msra.mxu0 0.0
  %99 = vmatprep.subr.mxu0 0.0
  %100 = vmatpush1.msra.mxu0 0.0
  %101 = vmatprep.subr.mxu0 0.0
  %102 = vmatpush1.msra.mxu0 0.0
  %103 = vmatprep.subr.mxu0 0.0
  %104 = vmatpush1.msra.mxu0 0.0
  %105 = vmatprep.subr.mxu0 0.0
  %106 = vmatpush1.msra.mxu0 0.0
  %107 = vmatprep.subr.mxu0 0.0
  %108 = vmatpush1.msra.mxu0 0.0
  %109 = vmatprep.subr.mxu0 0.0
  %110 = vmatpush1.msra.mxu0 0.0
  %111 = vmatprep.subr.mxu0 0.0
  %112 = vmatpush1.msra.mxu0 %v37
  %113 = vmatprep.subr.mxu0 0.0
  %114 = vmatpush1.msra.mxu0 %v36
  %115 = vmatprep.subr.mxu0 0.0
  %116 = vmatpush1.msra.mxu0 %v35
  %117 = vmatprep.subr.mxu0 0.0
  %118 = vmatpush1.msra.mxu0 %v34
  %119 = vmatprep.subr.mxu0 0.0
  %120 = vmatpush2.msra.mxu0 0.0
  %121 = vmatprep.subr.mxu0 0.0
  %122 = vmatpush2.msra.mxu0 0.0
  %123 = vmatprep.subr.mxu0 0.0
  %124 = vmatpush2.msra.mxu0 0.0
  %125 = vmatprep.subr.mxu0 0.0
  %126 = vmatpush2.msra.mxu0 0.0
  %127 = vmatprep.subr.mxu0 0.0
  %128 = vmatpush2.msra.mxu0 0.0
  %129 = vmatprep.subr.mxu0 0.0
  %130 = vmatpush2.msra.mxu0 0.0
  %131 = vmatprep.subr.mxu0 0.0
  %132 = vmatpush2.msra.mxu0 0.0
  %133 = vmatprep.subr.mxu0 0.0
  %134 = vmatpush2.msra.mxu0 0.0
  %135 = vmatprep.subr.mxu0 0.0
  %136 = vmatpush2.msra.mxu0 0.0
  %137 = vmatprep.subr.mxu0 0.0
  %138 = vmatpush2.msra.mxu0 0.0
  %139 = vmatprep.subr.mxu0 0.0
  %140 = vmatpush2.msra.mxu0 0.0
  %141 = vmatprep.subr.mxu0 0.0
  %142 = vmatpush2.msra.mxu0 0.0
  %143 = vmatprep.subr.mxu0 0.0
  %144 = vmatpush2.msra.mxu0 0.0
  %145 = vmatprep.subr.mxu0 0.0
  %146 = vmatpush2.msra.mxu0 0.0
  %147 = vmatprep.subr.mxu0 0.0
  %148 = vmatpush2.msra.mxu0 0.0
  %149 = vmatprep.subr.mxu0 0.0
  %150 = vmatpush2.msra.mxu0 0.0
  %151 = vmatprep.mubr.f32.mxu0 0.0
  %152 = vmatmul.mubr.f32.gmra.mxu0 %v40
  %v153 = vpop.f32.mrf.mxu0
  %v154 = vadd.f32 0.0, %v153
  %v155 = vpop.f32.mrf.mxu0
  %156 = vmatprep.mubr.f32.mxu0 0.0
  %157 = vmatmul.mubr.f32.gmra.mxu0 %v43
  %v158 = vpop.f32.mrf.mxu0
  %v159 = vadd.f32 0.0, %v158
  %v160 = vpop.f32.mrf.mxu0
  %161 = vmatprep.mubr.f32.mxu0 0.0
  %162 = vmatmul.mubr.f32.gmra.mxu0 %v46
  %v163 = vpop.f32.mrf.mxu0
  %v164 = vadd.f32 0.0, %v163
  %v165 = vpop.f32.mrf.mxu0
  %166 = vmatprep.mubr.f32.mxu0 0.0
  %167 = vmatmul.mubr.f32.gmra.mxu0 %v49
  %v168 = vpop.f32.mrf.mxu0
  %v169 = vadd.f32 0.0, %v168
  %v170 = vpop.f32.mrf.mxu0
  %171 = vmatprep.mubr.f32.mxu0 0.0
  %172 = vmatmul.mubr.f32.gmra.mxu0 %v52
  %v173 = vpop.f32.mrf.mxu0
  %v174 = vadd.f32 0.0, %v173
  %v175 = vpop.f32.mrf.mxu0
  %176 = vmatprep.mubr.f32.mxu0 0.0
  %177 = vmatmul.mubr.f32.gmra.mxu0 %v55
  %v178 = vpop.f32.mrf.mxu0
  %v179 = vadd.f32 0.0, %v178
  %v180 = vpop.f32.mrf.mxu0
  %181 = vmatprep.mubr.f32.mxu0 0.0
  %182 = vmatmul.mubr.f32.gmra.mxu0 %v58
  %v183 = vpop.f32.mrf.mxu0
  %v184 = vadd.f32 0.0, %v183
  %v185 = vpop.f32.mrf.mxu0
  %186 = vmatprep.mubr.f32.mxu0 0.0
  %187 = vmatmul.mubr.f32.gmra.mxu0 %v61
  %v188 = vpop.f32.mrf.mxu0
  %v189 = vadd.f32 0.0, %v188
  %v190 = vpop.f32.mrf.mxu0
  %191 = vmatprep.mubr.f32.mxu0 0.0
  %192 = vmatmul.mubr.f32.gmra.mxu0 %v64
  %v193 = vpop.f32.mrf.mxu0
  %v194 = vadd.f32 0.0, %v193
  %v195 = vpop.f32.mrf.mxu0
  %196 = vmatprep.mubr.f32.mxu0 0.0
  %197 = vmatmul.mubr.f32.gmra.mxu0 %v67
  %v198 = vpop.f32.mrf.mxu0
  %v199 = vadd.f32 0.0, %v198
  %v200 = vpop.f32.mrf.mxu0
  %201 = vmatprep.mubr.f32.mxu0 0.0
  %202 = vmatmul.mubr.f32.gmra.mxu0 %v70
  %v203 = vpop.f32.mrf.mxu0
  %v204 = vadd.f32 0.0, %v203
  %v205 = vpop.f32.mrf.mxu0
  %206 = vmatprep.mubr.f32.mxu0 0.0
  %207 = vmatmul.mubr.f32.gmra.mxu0 %v73
  %v208 = vpop.f32.mrf.mxu0
  %v209 = vadd.f32 0.0, %v208
  %v210 = vpop.f32.mrf.mxu0
  %211 = vmatprep.mubr.f32.mxu0 0.0
  %212 = vmatmul.mubr.f32.gmra.mxu0 %v76
  %v213 = vpop.f32.mrf.mxu0
  %v214 = vadd.f32 0.0, %v213
  %v215 = vpop.f32.mrf.mxu0
  %216 = vmatprep.mubr.f32.mxu0 0.0
  %217 = vmatmul.mubr.f32.gmra.mxu0 %v79
  %v218 = vpop.f32.mrf.mxu0
  %v219 = vadd.f32 0.0, %v218
  %v220 = vpop.f32.mrf.mxu0
  %221 = vmatprep.mubr.f32.mxu0 0.0
  %222 = vmatmul.mubr.f32.gmra.mxu0 %v82
  %v223 = vpop.f32.mrf.mxu0
  %v224 = vadd.f32 0.0, %v223
  %v225 = vpop.f32.mrf.mxu0
  %226 = vmatprep.mubr.f32.mxu0 0.0
  %227 = vmatmul.mubr.f32.gmra.mxu0 %v85
  %v228 = vpop.f32.mrf.mxu0
  %v229 = vadd.f32 0.0, %v228
  %v230 = vpop.f32.mrf.mxu0
  %231 = vdwg.mxu0
  %v232 = vld [vmem:[%s0] sm:$0xf]
  %v233 = vld [vmem:[%s0 + $0x4] sm:$0xf]
  %v234 = vld [vmem:[%s0 + $0x8] sm:$0xf]
  %v235 = vld [vmem:[%s0 + $0xc] sm:$0xf]
  %v236 = vld [vmem:[%s0 + $0x10] sm:$0xf]
  %v237 = vld [vmem:[%s0 + $0x14] sm:$0xf]
  %v238 = vld [vmem:[%s0 + $0x18] sm:$0xf]
  %v239 = vld [vmem:[%s0 + $0x1c] sm:$0xf]
  %v240 = vld [vmem:[%s0 + $0x20] sm:$0xf]
  %v241 = vld [vmem:[%s0 + $0x24] sm:$0xf]
  %v242 = vld [vmem:[%s0 + $0x28] sm:$0xf]
  %v243 = vld [vmem:[%s0 + $0x2c] sm:$0xf]
  %v244 = vld [vmem:[%s0 + $0x30] sm:$0xf]
  %v245 = vld [vmem:[%s0 + $0x34] sm:$0xf]
  %v246 = vld [vmem:[%s0 + $0x38] sm:$0xf]
  %v247 = vld [vmem:[%s0 + $0x3c] sm:$0xf]
  %v248 = vpack.c.bf16 %v159, %v154
  %v249 = vpack.c.bf16 %v169, %v164
  %v250 = vpack.c.bf16 %v179, %v174
  %v251 = vpack.c.bf16 %v189, %v184
  %v252 = vpack.c.bf16 %v199, %v194
  %v253 = vpack.c.bf16 %v209, %v204
  %v254 = vpack.c.bf16 %v219, %v214
  %v255 = vpack.c.bf16 %v229, %v224
  %v256 = vld [vmem:[%s3] sm:$0x1]
  %v258 = vlaneseq
  %v259 = vshrl.u32 %v258, 7
  %v260 = vsub.s32 0, %v259
  %v261 = vrot.slane %v256, %v260
  %v279 = vunpack.c.l.b16 %v232
  %v280 = vunpack.c.l.b16 %v233
  %v281 = vunpack.c.l.b16 %v234
  %v282 = vunpack.c.l.b16 %v235
  %v283 = vunpack.c.l.b16 %v236
  %v284 = vunpack.c.l.b16 %v237
  %v285 = vunpack.c.l.b16 %v238
  %v286 = vunpack.c.l.b16 %v239
  %v287 = vunpack.c.l.b16 %v240
  %v288 = vunpack.c.l.b16 %v241
  %v289 = vunpack.c.l.b16 %v242
  %v290 = vunpack.c.l.b16 %v243
  %v291 = vunpack.c.l.b16 %v244
  %v292 = vunpack.c.l.b16 %v245
  %v293 = vunpack.c.l.b16 %v246
  %v294 = vunpack.c.l.b16 %v247
  %v295 = vpack.c.b16 %v280, %v279
  %v296 = vpack.c.b16 %v282, %v281
  %v297 = vpack.c.b16 %v284, %v283
  %v298 = vpack.c.b16 %v286, %v285
  %v299 = vpack.c.b16 %v288, %v287
  %v300 = vpack.c.b16 %v290, %v289
  %v301 = vpack.c.b16 %v292, %v291
  %v302 = vpack.c.b16 %v294, %v293
  %311 = vmatprep.subr.bf16.mxu0 0
  %312 = vmatpush1.bf16.msra.mxu0 %v255
  %313 = vmatprep.subr.bf16.mxu0 0
  %314 = vmatpush1.bf16.msra.mxu0 %v254
  %315 = vmatprep.subr.bf16.mxu0 0
  %316 = vmatpush1.bf16.msra.mxu0 %v253
  %317 = vmatprep.subr.bf16.mxu0 0
  %318 = vmatpush1.bf16.msra.mxu0 %v252
  %319 = vmatprep.subr.bf16.mxu0 0
  %320 = vmatpush1.bf16.msra.mxu0 %v251
  %321 = vmatprep.subr.bf16.mxu0 0
  %322 = vmatpush1.bf16.msra.mxu0 %v250
  %323 = vmatprep.subr.bf16.mxu0 0
  %324 = vmatpush1.bf16.msra.mxu0 %v249
  %325 = vmatprep.subr.bf16.mxu0 0
  %326 = vmatpush1.bf16.msra.mxu0 %v248
  %327 = vmatprep.subr.bf16.mxu0 0
  %328 = vmatpush2.bf16.msra.mxu0 0
  %329 = vmatprep.subr.bf16.mxu0 0
  %330 = vmatpush2.bf16.msra.mxu0 0
  %331 = vmatprep.subr.bf16.mxu0 0
  %332 = vmatpush2.bf16.msra.mxu0 0
  %333 = vmatprep.subr.bf16.mxu0 0
  %334 = vmatpush2.bf16.msra.mxu0 0
  %335 = vmatprep.subr.bf16.mxu0 0
  %336 = vmatpush2.bf16.msra.mxu0 0
  %337 = vmatprep.subr.bf16.mxu0 0
  %338 = vmatpush2.bf16.msra.mxu0 0
  %339 = vmatprep.subr.bf16.mxu0 0
  %340 = vmatpush2.bf16.msra.mxu0 0
  %341 = vmatprep.subr.bf16.mxu0 0
  %342 = vmatpush2.bf16.msra.mxu0 0
  %343 = vmatprep.mubr.bf16.mxu0 0
  %344 = vmatmul.mubr.bf16.gmra.mxu0 %v295
  %v345 = vpop.f32.mrf.mxu0
  %v346 = vadd.f32 %v261, %v345
  %v347 = vpop.f32.mrf.mxu0
  %v348 = vpop.f32.mrf.mxu0
  %v349 = vadd.f32 %v261, %v348
  %v350 = vpop.f32.mrf.mxu0
  %351 = vmatprep.mubr.bf16.mxu0 0
  %352 = vmatmul.mubr.bf16.gmra.mxu0 %v296
  %v353 = vpop.f32.mrf.mxu0
  %v354 = vadd.f32 %v261, %v353
  %v355 = vpop.f32.mrf.mxu0
  %v356 = vpop.f32.mrf.mxu0
  %v357 = vadd.f32 %v261, %v356
  %v358 = vpop.f32.mrf.mxu0
  %359 = vmatprep.mubr.bf16.mxu0 0
  %360 = vmatmul.mubr.bf16.gmra.mxu0 %v297
  %v361 = vpop.f32.mrf.mxu0
  %v362 = vadd.f32 %v261, %v361
  %v363 = vpop.f32.mrf.mxu0
  %v364 = vpop.f32.mrf.mxu0
  %v365 = vadd.f32 %v261, %v364
  %v366 = vpop.f32.mrf.mxu0
  %367 = vmatprep.mubr.bf16.mxu0 0
  %368 = vmatmul.mubr.bf16.gmra.mxu0 %v298
  %v369 = vpop.f32.mrf.mxu0
  %v370 = vadd.f32 %v261, %v369
  %v371 = vpop.f32.mrf.mxu0
  %v372 = vpop.f32.mrf.mxu0
  %v373 = vadd.f32 %v261, %v372
  %v374 = vpop.f32.mrf.mxu0
  %375 = vmatprep.mubr.bf16.mxu0 0
  %376 = vmatmul.mubr.bf16.gmra.mxu0 %v299
  %v377 = vpop.f32.mrf.mxu0
  %v378 = vadd.f32 %v261, %v377
  %v379 = vpop.f32.mrf.mxu0
  %v380 = vpop.f32.mrf.mxu0
  %v381 = vadd.f32 %v261, %v380
  %v382 = vpop.f32.mrf.mxu0
  %383 = vmatprep.mubr.bf16.mxu0 0
  %384 = vmatmul.mubr.bf16.gmra.mxu0 %v300
  %v385 = vpop.f32.mrf.mxu0
  %v386 = vadd.f32 %v261, %v385
  %v387 = vpop.f32.mrf.mxu0
  %v388 = vpop.f32.mrf.mxu0
  %v389 = vadd.f32 %v261, %v388
  %v390 = vpop.f32.mrf.mxu0
  %391 = vmatprep.mubr.bf16.mxu0 0
  %392 = vmatmul.mubr.bf16.gmra.mxu0 %v301
  %v393 = vpop.f32.mrf.mxu0
  %v394 = vadd.f32 %v261, %v393
  %v395 = vpop.f32.mrf.mxu0
  %v396 = vpop.f32.mrf.mxu0
  %v397 = vadd.f32 %v261, %v396
  %v398 = vpop.f32.mrf.mxu0
  %399 = vmatprep.mubr.bf16.mxu0 0
  %400 = vmatmul.mubr.bf16.gmra.mxu0 %v302
  %v401 = vpop.f32.mrf.mxu0
  %v402 = vadd.f32 %v261, %v401
  %v403 = vpop.f32.mrf.mxu0
  %v404 = vpop.f32.mrf.mxu0
  %v405 = vadd.f32 %v261, %v404
  %v406 = vpop.f32.mrf.mxu0
  %407 = vdwg.mxu0
  %408 = vst [vmem:[%s4] sm:$0xff] %v346
  %409 = vst [vmem:[%s4 + $0x8] sm:$0xff] %v349
  %410 = vst [vmem:[%s4 + $0x10] sm:$0xff] %v354
  %411 = vst [vmem:[%s4 + $0x18] sm:$0xff] %v357
  %412 = vst [vmem:[%s4 + $0x20] sm:$0xff] %v362
  %413 = vst [vmem:[%s4 + $0x28] sm:$0xff] %v365
  %414 = vst [vmem:[%s4 + $0x30] sm:$0xff] %v370
  %415 = vst [vmem:[%s4 + $0x38] sm:$0xff] %v373
  %416 = vst [vmem:[%s4 + $0x40] sm:$0xff] %v378
  %417 = vst [vmem:[%s4 + $0x48] sm:$0xff] %v381
  %418 = vst [vmem:[%s4 + $0x50] sm:$0xff] %v386
  %419 = vst [vmem:[%s4 + $0x58] sm:$0xff] %v389
  %420 = vst [vmem:[%s4 + $0x60] sm:$0xff] %v394
  %421 = vst [vmem:[%s4 + $0x68] sm:$0xff] %v397
  %422 = vst [vmem:[%s4 + $0x70] sm:$0xff] %v402
  %423 = vst [vmem:[%s4 + $0x78] sm:$0xff] %v405
  // Predicated region
  $region18: #{graph_convolution.1} parent=0 // pred_check
    _
  $region19: #{graph_convolution.1} parent=0 // pred_check_branch
    %425 = sbr.rel (0) target = $region21
  $region20: #{graph_convolution.1} parent=0 // pred_region
    _
  $region21: #{graph_convolution.1} parent=0 // pred_fallthru
    _
  // Predicated region
  $region22: #{graph_convolution.1} parent=0 // pred_check
    _
  $region23: #{graph_convolution.1} parent=0 // pred_check_branch
    %427 = sbr.rel (0) target = $region25
  $region24: #{graph_convolution.1} parent=0 // pred_region
    _
  $region25: #{graph_convolution.1} parent=0 // pred_fallthru
    _

</llo_original>
